<compile_context>
chip_gen: v5e
topology: v5e:2x2
jax: 0.10.0
libtpu: 0.0.40
codegen_flags: <defaults>
</compile_context>

<pallas_src>
import functools

import jax
import jax.numpy as jnp
from jax.experimental import pallas as pl
from jax.experimental.pallas import tpu as pltpu


# Largest pipelined batch tile (multiple of 128).  Double-buffered x + out at
# out=32 is  2 * (6 + 32) * 32768 * 4 B ~= 10 MiB, safe under the default
# scoped-VMEM limit on v5e (16 MiB) and v6e/v7x (32 MiB).
_MAX_TILE_B = 32768


def decoder_kernel(w1_ref, b1_ref, w2_ref, b2_ref, x_ref, o_ref):
    """One feature-major batch tile.

    w1_ref: (9, 6)      b1_ref: (9, 1)
    w2_ref: (out, 9)    b2_ref: (out, 1)
    x_ref : (6, TILE_B) o_ref : (out, TILE_B)
    """
    # Layer 1: W1 @ x + b1, ReLU.  N = TILE_B sits on the lane axis.
    h = jnp.dot(w1_ref[...], x_ref[...], preferred_element_type=jnp.float32)
    h = jnp.maximum(h + b1_ref[...], 0.0)                    # (9, TILE_B)
    # Layer 2: W2 @ h + b2.
    y = jnp.dot(w2_ref[...], h, preferred_element_type=jnp.float32)
    o_ref[...] = (y + b2_ref[...]).astype(o_ref.dtype)       # (out, TILE_B)


@functools.partial(jax.jit, static_argnames=("tile_b", "out_dtype"))
def decoder_forward(x_t, w1, b1, w2, b2, *, tile_b=None, out_dtype=jnp.float32):
    """Feature-major decoder forward.

    x_t : (6, B) float32  (batch on the lane axis)
    w1  : (9, 6), b1: (9, 1), w2: (out, 9), b2: (out, 1)  -- torch layouts
    returns out_t : (out, B) in `out_dtype`
    """
    f_in, batch = x_t.shape
    out_size = w2.shape[0]

    if tile_b is None:
        # Single exact block when the whole batch fits a tile, else the
        # largest tuned tile (ragged tail handled by Pallas edge masking).
        tile_b = batch if batch <= _MAX_TILE_B else _MAX_TILE_B
    assert tile_b == batch or tile_b % 128 == 0, (
        "tile_b must equal the batch or be a multiple of 128 (lane width)")

    n_blocks = pl.cdiv(batch, tile_b)

    # Grid-invariant (VMEM-resident) blocks for the tiny weights/biases.
    resident = lambda shape: pl.BlockSpec(shape, lambda i: (0, 0))

    # Advisory cost model: memory-bound, tiny flop count.
    out_bytes = jnp.dtype(out_dtype).itemsize
    cost = pl.CostEstimate(
        flops=2 * batch * (f_in * 9 + 9 * out_size),
        transcendentals=0,
        bytes_accessed=int(4 * batch * f_in + out_bytes * batch * out_size
                           + 4 * (w1.size + b1.size + w2.size + b2.size)),
    )

    out_t = pl.pallas_call(
        decoder_kernel,
        out_shape=jax.ShapeDtypeStruct((out_size, batch), out_dtype),
        grid_spec=pltpu.PrefetchScalarGridSpec(
            num_scalar_prefetch=0,
            grid=(n_blocks,),
            in_specs=[
                resident(w1.shape),                              # (9, 6)
                resident(b1.shape),                              # (9, 1)
                resident(w2.shape),                              # (out, 9)
                resident(b2.shape),                              # (out, 1)
                pl.BlockSpec((f_in, tile_b), lambda i: (0, i)),  # x tile
            ],
            out_specs=pl.BlockSpec((out_size, tile_b), lambda i: (0, i)),
        ),
        compiler_params=pltpu.CompilerParams(
            dimension_semantics=("parallel",),   # both v7x TensorCores
        ),
        cost_estimate=cost,
    )(w1, b1, w2, b2, x_t)

    return out_t


def init_params(key, output_size):
    """Deterministic init with torch's native nn.Linear layouts:
    W: (out_features, in_features), b kept as a column (out_features, 1)."""
    k1, k2, k3, k4 = jax.random.split(key, 4)
    w1 = jax.random.normal(k1, (9, 6), jnp.float32) * 0.1
    b1 = jax.random.normal(k2, (9, 1), jnp.float32) * 0.1
    w2 = jax.random.normal(k3, (output_size, 9), jnp.float32) * 0.1
    b2 = jax.random.normal(k4, (output_size, 1), jnp.float32) * 0.1
    return w1, b1, w2, b2


def _reference(x_t, w1, b1, w2, b2):
    # Pure-JAX reference with standard torch semantics on x = x_t.T (B, 6).
    x = x_t.T
    return jnp.maximum(x @ w1.T + b1.T, 0.0) @ w2.T + b2.T   # (B, out)


if __name__ == "__main__":
    key = jax.random.PRNGKey(0)
    kx, kp = jax.random.split(key)

    output_size = 32
    w1, b1, w2, b2 = init_params(kp, output_size)

    # Case 1: auto tile -> single exact block (no padding, no ragged edge).
    batch = 1024
    x_t = jax.random.normal(kx, (6, batch), jnp.float32)
    out_t = jax.block_until_ready(decoder_forward(x_t, w1, b1, w2, b2))
    assert out_t.shape == (output_size, batch)
    assert jnp.allclose(out_t.T, _reference(x_t, w1, b1, w2, b2),
                        atol=1e-5, rtol=1e-5)

    # Case 2: explicit small tile -> 4 pipelined grid steps (divisible batch).
    out_t2 = jax.block_until_ready(
        decoder_forward(x_t, w1, b1, w2, b2, tile_b=256))
    assert jnp.allclose(out_t2.T, _reference(x_t, w1, b1, w2, b2),
                        atol=1e-5, rtol=1e-5)

    # Case 3: ragged batch (not a multiple of the tile) -> partial last block,
    # handled by Pallas edge masking (no jnp.pad, no output slice).
    batch3 = 1000
    x_t3 = jax.random.normal(kx, (6, batch3), jnp.float32)
    out_t3 = jax.block_until_ready(
        decoder_forward(x_t3, w1, b1, w2, b2, tile_b=256))
    assert out_t3.shape == (output_size, batch3)
    assert jnp.allclose(out_t3.T, _reference(x_t3, w1, b1, w2, b2),
                        atol=1e-5, rtol=1e-5)

    print("KERNEL_OK")
</pallas_src>

<mosaic_0001>
module attributes {stable_mosaic.version = 11 : i64} {
  func.func @decoder_kernel(%arg0: i32, %arg1: memref<9x6xf32, #tpu.memory_space<vmem>>, %arg2: memref<9x1xf32, #tpu.memory_space<vmem>>, %arg3: memref<32x9xf32, #tpu.memory_space<vmem>>, %arg4: memref<32x1xf32, #tpu.memory_space<vmem>>, %arg5: memref<6x1024xf32, #tpu.memory_space<vmem>>, %arg6: memref<32x1024xf32, #tpu.memory_space<vmem>>) attributes {dimension_semantics = [#tpu.dimension_semantics<parallel>], iteration_bounds = array<i64: 1>, scalar_prefetch = 0 : i64, scratch_operands = 0 : i64, tpu.core_type = #tpu.core_type<tc>, window_params = [{pipeline_mode = #tpu.pipeline_mode<synchronous>, transform_indices = @transform_0, window_bounds = array<i64: 9, 6>}, {pipeline_mode = #tpu.pipeline_mode<synchronous>, transform_indices = @transform_1, window_bounds = array<i64: 9, 1>}, {pipeline_mode = #tpu.pipeline_mode<synchronous>, transform_indices = @transform_2, window_bounds = array<i64: 32, 9>}, {pipeline_mode = #tpu.pipeline_mode<synchronous>, transform_indices = @transform_3, window_bounds = array<i64: 32, 1>}, {transform_indices = @transform_4, window_bounds = array<i64: 6, 1024>}, {transform_indices = @transform_5, window_bounds = array<i64: 32, 1024>}]} {
    %c0 = arith.constant 0 : index
    %c0_0 = arith.constant 0 : index
    %0 = vector.load %arg1[%c0, %c0_0] : memref<9x6xf32, #tpu.memory_space<vmem>>, vector<9x6xf32>
    %c0_1 = arith.constant 0 : index
    %c0_2 = arith.constant 0 : index
    %1 = vector.load %arg5[%c0_1, %c0_2] : memref<6x1024xf32, #tpu.memory_space<vmem>>, vector<6x1024xf32>
    %cst = arith.constant dense<0.000000e+00> : vector<9x1024xf32>
    %2 = tpu.matmul %0, %1, %cst {dimension_numbers = #tpu.dot_dimension_numbers<[1], [0], [0], [1], [0, 0, 1, 1], [], []>} : vector<9x6xf32>, vector<6x1024xf32>, vector<9x1024xf32> -> vector<9x1024xf32>
    %c0_3 = arith.constant 0 : index
    %c0_4 = arith.constant 0 : index
    %3 = vector.load %arg2[%c0_3, %c0_4] : memref<9x1xf32, #tpu.memory_space<vmem>>, vector<9x1xf32>
    %4 = vector.broadcast %3 : vector<9x1xf32> to vector<9x1024xf32>
    %5 = arith.addf %2, %4 : vector<9x1024xf32>
    %cst_5 = arith.constant 0.000000e+00 : f32
    %6 = vector.broadcast %cst_5 : f32 to vector<9x1024xf32>
    %7 = arith.maximumf %5, %6 : vector<9x1024xf32>
    %c0_6 = arith.constant 0 : index
    %c0_7 = arith.constant 0 : index
    %8 = vector.load %arg3[%c0_6, %c0_7] : memref<32x9xf32, #tpu.memory_space<vmem>>, vector<32x9xf32>
    %cst_8 = arith.constant dense<0.000000e+00> : vector<32x1024xf32>
    %9 = tpu.matmul %8, %7, %cst_8 {dimension_numbers = #tpu.dot_dimension_numbers<[1], [0], [0], [1], [0, 0, 1, 1], [], []>} : vector<32x9xf32>, vector<9x1024xf32>, vector<32x1024xf32> -> vector<32x1024xf32>
    %c0_9 = arith.constant 0 : index
    %c0_10 = arith.constant 0 : index
    %10 = vector.load %arg4[%c0_9, %c0_10] : memref<32x1xf32, #tpu.memory_space<vmem>>, vector<32x1xf32>
    %11 = vector.broadcast %10 : vector<32x1xf32> to vector<32x1024xf32>
    %12 = arith.addf %9, %11 : vector<32x1024xf32>
    %c0_11 = arith.constant 0 : index
    %c0_12 = arith.constant 0 : index
    %13 = vector.load %arg6[%c0_11, %c0_12] : memref<32x1024xf32, #tpu.memory_space<vmem>>, vector<32x1024xf32>
    tpu.vector_store %arg6[%c0_11, %c0_12], %12 {strides = array<i32>} : memref<32x1024xf32, #tpu.memory_space<vmem>>, vector<32x1024xf32>,
    return
  }
  func.func @transform_0(%arg0: i32) -> (i32, i32) {
    %c0_i32 = arith.constant 0 : i32
    %c0_i32_0 = arith.constant 0 : i32
    %c0_i32_1 = arith.constant 0 : i32
    return %c0_i32, %c0_i32_0 : i32, i32
  }
  func.func @transform_1(%arg0: i32) -> (i32, i32) {
    %c0_i32 = arith.constant 0 : i32
    %c0_i32_0 = arith.constant 0 : i32
    %c0_i32_1 = arith.constant 0 : i32
    return %c0_i32, %c0_i32_0 : i32, i32
  }
  func.func @transform_2(%arg0: i32) -> (i32, i32) {
    %c0_i32 = arith.constant 0 : i32
    %c0_i32_0 = arith.constant 0 : i32
    %c0_i32_1 = arith.constant 0 : i32
    return %c0_i32, %c0_i32_0 : i32, i32
  }
  func.func @transform_3(%arg0: i32) -> (i32, i32) {
    %c0_i32 = arith.constant 0 : i32
    %c0_i32_0 = arith.constant 0 : i32
    %c0_i32_1 = arith.constant 0 : i32
    return %c0_i32, %c0_i32_0 : i32, i32
  }
  func.func @transform_4(%arg0: i32) -> (i32, i32) {
    %c0_i32 = arith.constant 0 : i32
    %c0_i32_0 = arith.constant 0 : i32
    return %c0_i32, %arg0 : i32, i32
  }
  func.func @transform_5(%arg0: i32) -> (i32, i32) {
    %c0_i32 = arith.constant 0 : i32
    %c0_i32_0 = arith.constant 0 : i32
    return %c0_i32, %arg0 : i32, i32
  }
}

</mosaic_0001>

<llo_original>
// kernel: decoder_forward.1
$region0: #{decoder_forward.1}
  #allocation0 [shape = 'u32[]', space=smem, size = 0x4, offset = 0x4, fixed_abs, tag = 'smem constant byte address 0x4 - core index']
  #allocation1 [shape = 'u32[72,128]{1,0:T(1,128)}', space=vmem, size = 0x9000, scoped, tag = 'internal scratch']
  %s0 = inlined_call_operand.vmem [shape: f32[9,6], index: 0, kind: input, shape index: {}]
  %s1 = inlined_call_operand.vmem [shape: f32[9,1], index: 1, kind: input, shape index: {}]
  %s2 = inlined_call_operand.vmem [shape: f32[32,9], index: 2, kind: input, shape index: {}]
  %s3 = inlined_call_operand.vmem [shape: f32[32,1], index: 3, kind: input, shape index: {}]
  %s4 = inlined_call_operand.vmem [shape: f32[6,1024], index: 4, kind: input, shape index: {}]
  %s5 = inlined_call_operand.hbm [shape: f32[32,1024], index: 5, kind: output, shape index: {}]
  %s6 = sld [smem:[#allocation0]]
  $region30: #{decoder_forward.1} parent=0
    _
  %s8 = ssub.s32 1, %s6
  %s9 = scalar_select 0, %s8, %s6
  $region1: #{decoder_forward.1} parent=0
    #allocation2 [shape = 'u8[131072]{0}', space=vmem, size = 0x20000, scoped, tag = 'output window, operand 0, single buffered']
    #allocation3 [shape = 's32[1]{0}', space=sflag, size = 0x4, scoped, tag = 'scoped memory for decoder_forward.1']
    %10 = vsyncpa [#allocation3], 0
    // Predicated region
    $region2: #{decoder_forward.1} parent=1 // pred_check
      _
    $region3: #{decoder_forward.1} parent=1 // pred_check_branch
      %12 = sbr.rel (0) target = $region5
    $region4: #{decoder_forward.1} parent=1 // pred_region
      _
    $region5: #{decoder_forward.1} parent=1 // pred_fallthru
      _
    // Predicated region
    $region6: #{decoder_forward.1} parent=1 // pred_check
      _
    $region7: #{decoder_forward.1} parent=1 // pred_check_branch
      %14 = sbr.rel (0) target = $region9
    $region8: #{decoder_forward.1} parent=1 // pred_region
      _
    $region9: #{decoder_forward.1} parent=1 // pred_fallthru
      _
    // Predicated region
    $region10: #{decoder_forward.1} parent=1 // pred_check
      _
    $region11: #{decoder_forward.1} parent=1 // pred_check_branch
      %16 = sbr.rel (0) target = $region13
    $region12: #{decoder_forward.1} parent=1 // pred_region
      _
    $region13: #{decoder_forward.1} parent=1 // pred_fallthru
      _
    // Predicated region
    $region14: #{decoder_forward.1} parent=1 // pred_check
      _
    $region15: #{decoder_forward.1} parent=1 // pred_check_branch
      %18 = sbr.rel (0) target = $region17
    $region16: #{decoder_forward.1} parent=1 // pred_region
      _
    $region17: #{decoder_forward.1} parent=1 // pred_fallthru
      _
    // Predicated region
    $region18: #{decoder_forward.1} parent=1 // pred_check
      _
    $region19: #{decoder_forward.1} parent=1 // pred_check_branch
      %20 = sbr.rel (0) target = $region21
    $region20: #{decoder_forward.1} parent=1 // pred_region
      _
    $region21: #{decoder_forward.1} parent=1 // pred_fallthru
      _
    %v21 = vld [vmem:[%s0] sm:$0xff]
    %v22 = vld [vmem:[%s0 + $0x8] sm:$0x1]
    %v23 = vld [vmem:[%s4] sm:$0x3f]
    %v24 = vld [vmem:[%s4 + $0x8] sm:$0x3f]
    %v25 = vld [vmem:[%s4 + $0x10] sm:$0x3f]
    %v26 = vld [vmem:[%s4 + $0x18] sm:$0x3f]
    %v27 = vld [vmem:[%s4 + $0x20] sm:$0x3f]
    %v28 = vld [vmem:[%s4 + $0x28] sm:$0x3f]
    %v29 = vld [vmem:[%s4 + $0x30] sm:$0x3f]
    %v30 = vld [vmem:[%s4 + $0x38] sm:$0x3f]
    %v31 = vld [vmem:[%s1] sm:$0xff]
    %v32 = vld [vmem:[%s1 + $0x8] sm:$0x1]
    %34 = vset.pattern.permute.xlu0 0
    %35 = vperm.xlu0 %34, %v31
    %v36 = vpop.permute.xlu0 %35
    %39 = vset.pattern.permute.xlu0 0
    %40 = vperm.xlu0 %39, %v32
    %v41 = vpop.permute.xlu0 %40
    %vm43 = vcmask 48128
    %v45 = vsel %vm43, %v21, 0
    %v48 = vsel %vm43, %v22, 0
    %vm50 = vcmask 1045504
    %v52 = vsel %vm50, %v23, 0
    %v55 = vsel %vm50, %v24, 0
    %v58 = vsel %vm50, %v25, 0
    %v61 = vsel %vm50, %v26, 0
    %v64 = vsel %vm50, %v27, 0
    %v67 = vsel %vm50, %v28, 0
    %v70 = vsel %vm50, %v29, 0
    %v73 = vsel %vm50, %v30, 0
    %75 = vmatpush.msra.mxu0 0.0
    %76 = vmatpush.msra.mxu0 0.0
    %77 = vmatpush.msra.mxu0 0.0
    %78 = vmatpush.msra.mxu0 0.0
    %79 = vmatpush.msra.mxu0 0.0
    %80 = vmatpush.msra.mxu0 0.0
    %81 = vmatpush.msra.mxu0 0.0
    %82 = vmatpush.msra.mxu0 0.0
    %83 = vmatpush.msra.mxu0 0.0
    %84 = vmatpush.msra.mxu0 0.0
    %85 = vmatpush.msra.mxu0 0.0
    %86 = vmatpush.msra.mxu0 0.0
    %87 = vmatpush.msra.mxu0 0.0
    %88 = vmatpush.msra.mxu0 0.0
    %89 = vmatpush.msra.mxu0 0.0
    %90 = vmatpush.msra.mxu0 %v52
    %91 = vmatmul.f32.gmra.mxu0 %v45
    %v92 = vpop.f32.mrf.mxu0
    %v93 = vadd.f32 %v36, %v92
    %94 = vmatmul.f32.gmra.mxu0 %v48
    %v95 = vpop.f32.mrf.mxu0
    %v96 = vadd.f32 %v41, %v95
    %97 = vdwg.mxu0
    %98 = vmatpush.msra.mxu0 0.0
    %99 = vmatpush.msra.mxu0 0.0
    %100 = vmatpush.msra.mxu0 0.0
    %101 = vmatpush.msra.mxu0 0.0
    %102 = vmatpush.msra.mxu0 0.0
    %103 = vmatpush.msra.mxu0 0.0
    %104 = vmatpush.msra.mxu0 0.0
    %105 = vmatpush.msra.mxu0 0.0
    %106 = vmatpush.msra.mxu0 0.0
    %107 = vmatpush.msra.mxu0 0.0
    %108 = vmatpush.msra.mxu0 0.0
    %109 = vmatpush.msra.mxu0 0.0
    %110 = vmatpush.msra.mxu0 0.0
    %111 = vmatpush.msra.mxu0 0.0
    %112 = vmatpush.msra.mxu0 0.0
    %113 = vmatpush.msra.mxu0 %v55
    %114 = vmatmul.f32.gmra.mxu0 %v45
    %v115 = vpop.f32.mrf.mxu0
    %v116 = vadd.f32 %v36, %v115
    %117 = vmatmul.f32.gmra.mxu0 %v48
    %v118 = vpop.f32.mrf.mxu0
    %v119 = vadd.f32 %v41, %v118
    %120 = vdwg.mxu0
    %121 = vmatpush.msra.mxu0 0.0
    %122 = vmatpush.msra.mxu0 0.0
    %123 = vmatpush.msra.mxu0 0.0
    %124 = vmatpush.msra.mxu0 0.0
    %125 = vmatpush.msra.mxu0 0.0
    %126 = vmatpush.msra.mxu0 0.0
    %127 = vmatpush.msra.mxu0 0.0
    %128 = vmatpush.msra.mxu0 0.0
    %129 = vmatpush.msra.mxu0 0.0
    %130 = vmatpush.msra.mxu0 0.0
    %131 = vmatpush.msra.mxu0 0.0
    %132 = vmatpush.msra.mxu0 0.0
    %133 = vmatpush.msra.mxu0 0.0
    %134 = vmatpush.msra.mxu0 0.0
    %135 = vmatpush.msra.mxu0 0.0
    %136 = vmatpush.msra.mxu0 %v58
    %137 = vmatmul.f32.gmra.mxu0 %v45
    %v138 = vpop.f32.mrf.mxu0
    %v139 = vadd.f32 %v36, %v138
    %140 = vmatmul.f32.gmra.mxu0 %v48
    %v141 = vpop.f32.mrf.mxu0
    %v142 = vadd.f32 %v41, %v141
    %143 = vdwg.mxu0
    %144 = vmatpush.msra.mxu0 0.0
    %145 = vmatpush.msra.mxu0 0.0
    %146 = vmatpush.msra.mxu0 0.0
    %147 = vmatpush.msra.mxu0 0.0
    %148 = vmatpush.msra.mxu0 0.0
    %149 = vmatpush.msra.mxu0 0.0
    %150 = vmatpush.msra.mxu0 0.0
    %151 = vmatpush.msra.mxu0 0.0
    %152 = vmatpush.msra.mxu0 0.0
    %153 = vmatpush.msra.mxu0 0.0
    %154 = vmatpush.msra.mxu0 0.0
    %155 = vmatpush.msra.mxu0 0.0
    %156 = vmatpush.msra.mxu0 0.0
    %157 = vmatpush.msra.mxu0 0.0
    %158 = vmatpush.msra.mxu0 0.0
    %159 = vmatpush.msra.mxu0 %v61
    %160 = vmatmul.f32.gmra.mxu0 %v45
    %v161 = vpop.f32.mrf.mxu0
    %v162 = vadd.f32 %v36, %v161
    %163 = vmatmul.f32.gmra.mxu0 %v48
    %v164 = vpop.f32.mrf.mxu0
    %v165 = vadd.f32 %v41, %v164
    %166 = vdwg.mxu0
    %167 = vmatpush.msra.mxu0 0.0
    %168 = vmatpush.msra.mxu0 0.0
    %169 = vmatpush.msra.mxu0 0.0
    %170 = vmatpush.msra.mxu0 0.0
    %171 = vmatpush.msra.mxu0 0.0
    %172 = vmatpush.msra.mxu0 0.0
    %173 = vmatpush.msra.mxu0 0.0
    %174 = vmatpush.msra.mxu0 0.0
    %175 = vmatpush.msra.mxu0 0.0
    %176 = vmatpush.msra.mxu0 0.0
    %177 = vmatpush.msra.mxu0 0.0
    %178 = vmatpush.msra.mxu0 0.0
    %179 = vmatpush.msra.mxu0 0.0
    %180 = vmatpush.msra.mxu0 0.0
    %181 = vmatpush.msra.mxu0 0.0
    %182 = vmatpush.msra.mxu0 %v64
    %183 = vmatmul.f32.gmra.mxu0 %v45
    %v184 = vpop.f32.mrf.mxu0
    %v185 = vadd.f32 %v36, %v184
    %186 = vmatmul.f32.gmra.mxu0 %v48
    %v187 = vpop.f32.mrf.mxu0
    %v188 = vadd.f32 %v41, %v187
    %189 = vdwg.mxu0
    %190 = vmatpush.msra.mxu0 0.0
    %191 = vmatpush.msra.mxu0 0.0
    %192 = vmatpush.msra.mxu0 0.0
    %193 = vmatpush.msra.mxu0 0.0
    %194 = vmatpush.msra.mxu0 0.0
    %195 = vmatpush.msra.mxu0 0.0
    %196 = vmatpush.msra.mxu0 0.0
    %197 = vmatpush.msra.mxu0 0.0
    %198 = vmatpush.msra.mxu0 0.0
    %199 = vmatpush.msra.mxu0 0.0
    %200 = vmatpush.msra.mxu0 0.0
    %201 = vmatpush.msra.mxu0 0.0
    %202 = vmatpush.msra.mxu0 0.0
    %203 = vmatpush.msra.mxu0 0.0
    %204 = vmatpush.msra.mxu0 0.0
    %205 = vmatpush.msra.mxu0 %v67
    %206 = vmatmul.f32.gmra.mxu0 %v45
    %v207 = vpop.f32.mrf.mxu0
    %v208 = vadd.f32 %v36, %v207
    %209 = vmatmul.f32.gmra.mxu0 %v48
    %v210 = vpop.f32.mrf.mxu0
    %v211 = vadd.f32 %v41, %v210
    %212 = vdwg.mxu0
    %213 = vmatpush.msra.mxu0 0.0
    %214 = vmatpush.msra.mxu0 0.0
    %215 = vmatpush.msra.mxu0 0.0
    %216 = vmatpush.msra.mxu0 0.0
    %217 = vmatpush.msra.mxu0 0.0
    %218 = vmatpush.msra.mxu0 0.0
    %219 = vmatpush.msra.mxu0 0.0
    %220 = vmatpush.msra.mxu0 0.0
    %221 = vmatpush.msra.mxu0 0.0
    %222 = vmatpush.msra.mxu0 0.0
    %223 = vmatpush.msra.mxu0 0.0
    %224 = vmatpush.msra.mxu0 0.0
    %225 = vmatpush.msra.mxu0 0.0
    %226 = vmatpush.msra.mxu0 0.0
    %227 = vmatpush.msra.mxu0 0.0
    %228 = vmatpush.msra.mxu0 %v70
    %229 = vmatmul.f32.gmra.mxu0 %v45
    %v230 = vpop.f32.mrf.mxu0
    %v231 = vadd.f32 %v36, %v230
    %232 = vmatmul.f32.gmra.mxu0 %v48
    %v233 = vpop.f32.mrf.mxu0
    %v234 = vadd.f32 %v41, %v233
    %235 = vdwg.mxu0
    %236 = vmatpush.msra.mxu0 0.0
    %237 = vmatpush.msra.mxu0 0.0
    %238 = vmatpush.msra.mxu0 0.0
    %239 = vmatpush.msra.mxu0 0.0
    %240 = vmatpush.msra.mxu0 0.0
    %241 = vmatpush.msra.mxu0 0.0
    %242 = vmatpush.msra.mxu0 0.0
    %243 = vmatpush.msra.mxu0 0.0
    %244 = vmatpush.msra.mxu0 0.0
    %245 = vmatpush.msra.mxu0 0.0
    %246 = vmatpush.msra.mxu0 0.0
    %247 = vmatpush.msra.mxu0 0.0
    %248 = vmatpush.msra.mxu0 0.0
    %249 = vmatpush.msra.mxu0 0.0
    %250 = vmatpush.msra.mxu0 0.0
    %251 = vmatpush.msra.mxu0 %v73
    %252 = vmatmul.f32.gmra.mxu0 %v45
    %v253 = vpop.f32.mrf.mxu0
    %v254 = vadd.f32 %v36, %v253
    %255 = vmatmul.f32.gmra.mxu0 %v48
    %v256 = vpop.f32.mrf.mxu0
    %v257 = vadd.f32 %v41, %v256
    %258 = vdwg.mxu0
    %v259 = vmax.f32 %v93, 0.0
    %v260 = vmax.f32 %v116, 0.0
    %v261 = vmax.f32 %v139, 0.0
    %v262 = vmax.f32 %v162, 0.0
    %v263 = vmax.f32 %v185, 0.0
    %v264 = vmax.f32 %v208, 0.0
    %v265 = vmax.f32 %v231, 0.0
    %v266 = vmax.f32 %v254, 0.0
    %v267 = vmax.f32 %v96, 0.0
    %v268 = vmax.f32 %v119, 0.0
    %v269 = vmax.f32 %v142, 0.0
    %v270 = vmax.f32 %v165, 0.0
    %v271 = vmax.f32 %v188, 0.0
    %v272 = vmax.f32 %v211, 0.0
    %v273 = vmax.f32 %v234, 0.0
    %v274 = vmax.f32 %v257, 0.0
    %v275 = vld [vmem:[%s2] sm:$0xff]
    %v276 = vld [vmem:[%s2 + $0x8] sm:$0xff]
    %v277 = vld [vmem:[%s2 + $0x10] sm:$0xff]
    %v278 = vld [vmem:[%s2 + $0x18] sm:$0xff]
    %v279 = vld [vmem:[%s3] sm:$0xff]
    %v280 = vld [vmem:[%s3 + $0x8] sm:$0xff]
    %v281 = vld [vmem:[%s3 + $0x10] sm:$0xff]
    %v282 = vld [vmem:[%s3 + $0x18] sm:$0xff]
    %284 = vset.pattern.permute.xlu0 0
    %285 = vperm.xlu0 %284, %v279
    %v286 = vpop.permute.xlu0 %285
    %289 = vset.pattern.permute.xlu0 0
    %290 = vperm.xlu0 %289, %v280
    %v291 = vpop.permute.xlu0 %290
    %294 = vset.pattern.permute.xlu0 0
    %295 = vperm.xlu0 %294, %v281
    %v296 = vpop.permute.xlu0 %295
    %299 = vset.pattern.permute.xlu0 0
    %300 = vperm.xlu0 %299, %v282
    %v301 = vpop.permute.xlu0 %300
    %vm303 = vcmask 72704
    %v305 = vsel %vm303, %v275, 0
    %v308 = vsel %vm303, %v276, 0
    %v311 = vsel %vm303, %v277, 0
    %v314 = vsel %vm303, %v278, 0
    %vm316 = vcmask 1040384
    %v318 = vsel %vm316, %v267, 0
    %v321 = vsel %vm316, %v268, 0
    %v324 = vsel %vm316, %v269, 0
    %v327 = vsel %vm316, %v270, 0
    %v330 = vsel %vm316, %v271, 0
    %v333 = vsel %vm316, %v272, 0
    %v336 = vsel %vm316, %v273, 0
    %v339 = vsel %vm316, %v274, 0
    %341 = vmatpush.msra.mxu0 0.0
    %342 = vmatpush.msra.mxu0 0.0
    %343 = vmatpush.msra.mxu0 0.0
    %344 = vmatpush.msra.mxu0 0.0
    %345 = vmatpush.msra.mxu0 0.0
    %346 = vmatpush.msra.mxu0 0.0
    %347 = vmatpush.msra.mxu0 0.0
    %348 = vmatpush.msra.mxu0 0.0
    %349 = vmatpush.msra.mxu0 0.0
    %350 = vmatpush.msra.mxu0 0.0
    %351 = vmatpush.msra.mxu0 0.0
    %352 = vmatpush.msra.mxu0 0.0
    %353 = vmatpush.msra.mxu0 0.0
    %354 = vmatpush.msra.mxu0 0.0
    %355 = vmatpush.msra.mxu0 %v318
    %356 = vmatpush.msra.mxu0 %v259
    %357 = vmatmul.f32.gmra.mxu0 %v305
    %v358 = vpop.f32.mrf.mxu0
    %v359 = vadd.f32 %v286, %v358
    %360 = vmatmul.f32.gmra.mxu0 %v308
    %v361 = vpop.f32.mrf.mxu0
    %v362 = vadd.f32 %v291, %v361
    %363 = vmatmul.f32.gmra.mxu0 %v311
    %v364 = vpop.f32.mrf.mxu0
    %v365 = vadd.f32 %v296, %v364
    %366 = vmatmul.f32.gmra.mxu0 %v314
    %v367 = vpop.f32.mrf.mxu0
    %v368 = vadd.f32 %v301, %v367
    %369 = vdwg.mxu0
    %370 = vmatpush.msra.mxu0 0.0
    %371 = vmatpush.msra.mxu0 0.0
    %372 = vmatpush.msra.mxu0 0.0
    %373 = vmatpush.msra.mxu0 0.0
    %374 = vmatpush.msra.mxu0 0.0
    %375 = vmatpush.msra.mxu0 0.0
    %376 = vmatpush.msra.mxu0 0.0
    %377 = vmatpush.msra.mxu0 0.0
    %378 = vmatpush.msra.mxu0 0.0
    %379 = vmatpush.msra.mxu0 0.0
    %380 = vmatpush.msra.mxu0 0.0
    %381 = vmatpush.msra.mxu0 0.0
    %382 = vmatpush.msra.mxu0 0.0
    %383 = vmatpush.msra.mxu0 0.0
    %384 = vmatpush.msra.mxu0 %v321
    %385 = vmatpush.msra.mxu0 %v260
    %386 = vmatmul.f32.gmra.mxu0 %v305
    %v387 = vpop.f32.mrf.mxu0
    %v388 = vadd.f32 %v286, %v387
    %389 = vmatmul.f32.gmra.mxu0 %v308
    %v390 = vpop.f32.mrf.mxu0
    %v391 = vadd.f32 %v291, %v390
    %392 = vmatmul.f32.gmra.mxu0 %v311
    %v393 = vpop.f32.mrf.mxu0
    %v394 = vadd.f32 %v296, %v393
    %395 = vmatmul.f32.gmra.mxu0 %v314
    %v396 = vpop.f32.mrf.mxu0
    %v397 = vadd.f32 %v301, %v396
    %398 = vdwg.mxu0
    %399 = vmatpush.msra.mxu0 0.0
    %400 = vmatpush.msra.mxu0 0.0
    %401 = vmatpush.msra.mxu0 0.0
    %402 = vmatpush.msra.mxu0 0.0
    %403 = vmatpush.msra.mxu0 0.0
    %404 = vmatpush.msra.mxu0 0.0
    %405 = vmatpush.msra.mxu0 0.0
    %406 = vmatpush.msra.mxu0 0.0
    %407 = vmatpush.msra.mxu0 0.0
    %408 = vmatpush.msra.mxu0 0.0
    %409 = vmatpush.msra.mxu0 0.0
    %410 = vmatpush.msra.mxu0 0.0
    %411 = vmatpush.msra.mxu0 0.0
    %412 = vmatpush.msra.mxu0 0.0
    %413 = vmatpush.msra.mxu0 %v324
    %414 = vmatpush.msra.mxu0 %v261
    %415 = vmatmul.f32.gmra.mxu0 %v305
    %v416 = vpop.f32.mrf.mxu0
    %v417 = vadd.f32 %v286, %v416
    %418 = vmatmul.f32.gmra.mxu0 %v308
    %v419 = vpop.f32.mrf.mxu0
    %v420 = vadd.f32 %v291, %v419
    %421 = vmatmul.f32.gmra.mxu0 %v311
    %v422 = vpop.f32.mrf.mxu0
    %v423 = vadd.f32 %v296, %v422
    %424 = vmatmul.f32.gmra.mxu0 %v314
    %v425 = vpop.f32.mrf.mxu0
    %v426 = vadd.f32 %v301, %v425
    %427 = vdwg.mxu0
    %428 = vmatpush.msra.mxu0 0.0
    %429 = vmatpush.msra.mxu0 0.0
    %430 = vmatpush.msra.mxu0 0.0
    %431 = vmatpush.msra.mxu0 0.0
    %432 = vmatpush.msra.mxu0 0.0
    %433 = vmatpush.msra.mxu0 0.0
    %434 = vmatpush.msra.mxu0 0.0
    %435 = vmatpush.msra.mxu0 0.0
    %436 = vmatpush.msra.mxu0 0.0
    %437 = vmatpush.msra.mxu0 0.0
    %438 = vmatpush.msra.mxu0 0.0
    %439 = vmatpush.msra.mxu0 0.0
    %440 = vmatpush.msra.mxu0 0.0
    %441 = vmatpush.msra.mxu0 0.0
    %442 = vmatpush.msra.mxu0 %v327
    %443 = vmatpush.msra.mxu0 %v262
    %444 = vmatmul.f32.gmra.mxu0 %v305
    %v445 = vpop.f32.mrf.mxu0
    %v446 = vadd.f32 %v286, %v445
    %447 = vmatmul.f32.gmra.mxu0 %v308
    %v448 = vpop.f32.mrf.mxu0
    %v449 = vadd.f32 %v291, %v448
    %450 = vmatmul.f32.gmra.mxu0 %v311
    %v451 = vpop.f32.mrf.mxu0
    %v452 = vadd.f32 %v296, %v451
    %453 = vmatmul.f32.gmra.mxu0 %v314
    %v454 = vpop.f32.mrf.mxu0
    %v455 = vadd.f32 %v301, %v454
    %456 = vdwg.mxu0
    %457 = vmatpush.msra.mxu0 0.0
    %458 = vmatpush.msra.mxu0 0.0
    %459 = vmatpush.msra.mxu0 0.0
    %460 = vmatpush.msra.mxu0 0.0
    %461 = vmatpush.msra.mxu0 0.0
    %462 = vmatpush.msra.mxu0 0.0
    %463 = vmatpush.msra.mxu0 0.0
    %464 = vmatpush.msra.mxu0 0.0
    %465 = vmatpush.msra.mxu0 0.0
    %466 = vmatpush.msra.mxu0 0.0
    %467 = vmatpush.msra.mxu0 0.0
    %468 = vmatpush.msra.mxu0 0.0
    %469 = vmatpush.msra.mxu0 0.0
    %470 = vmatpush.msra.mxu0 0.0
    %471 = vmatpush.msra.mxu0 %v330
    %472 = vmatpush.msra.mxu0 %v263
    %473 = vmatmul.f32.gmra.mxu0 %v305
    %v474 = vpop.f32.mrf.mxu0
    %v475 = vadd.f32 %v286, %v474
    %476 = vmatmul.f32.gmra.mxu0 %v308
    %v477 = vpop.f32.mrf.mxu0
    %v478 = vadd.f32 %v291, %v477
    %479 = vmatmul.f32.gmra.mxu0 %v311
    %v480 = vpop.f32.mrf.mxu0
    %v481 = vadd.f32 %v296, %v480
    %482 = vmatmul.f32.gmra.mxu0 %v314
    %v483 = vpop.f32.mrf.mxu0
    %v484 = vadd.f32 %v301, %v483
    %485 = vdwg.mxu0
    %486 = vmatpush.msra.mxu0 0.0
    %487 = vmatpush.msra.mxu0 0.0
    %488 = vmatpush.msra.mxu0 0.0
    %489 = vmatpush.msra.mxu0 0.0
    %490 = vmatpush.msra.mxu0 0.0
    %491 = vmatpush.msra.mxu0 0.0
    %492 = vmatpush.msra.mxu0 0.0
    %493 = vmatpush.msra.mxu0 0.0
    %494 = vmatpush.msra.mxu0 0.0
    %495 = vmatpush.msra.mxu0 0.0
    %496 = vmatpush.msra.mxu0 0.0
    %497 = vmatpush.msra.mxu0 0.0
    %498 = vmatpush.msra.mxu0 0.0
    %499 = vmatpush.msra.mxu0 0.0
    %500 = vmatpush.msra.mxu0 %v333
    %501 = vmatpush.msra.mxu0 %v264
    %502 = vmatmul.f32.gmra.mxu0 %v305
    %v503 = vpop.f32.mrf.mxu0
    %v504 = vadd.f32 %v286, %v503
    %505 = vmatmul.f32.gmra.mxu0 %v308
    %v506 = vpop.f32.mrf.mxu0
    %v507 = vadd.f32 %v291, %v506
    %508 = vmatmul.f32.gmra.mxu0 %v311
    %v509 = vpop.f32.mrf.mxu0
    %v510 = vadd.f32 %v296, %v509
    %511 = vmatmul.f32.gmra.mxu0 %v314
    %v512 = vpop.f32.mrf.mxu0
    %v513 = vadd.f32 %v301, %v512
    %514 = vdwg.mxu0
    %515 = vmatpush.msra.mxu0 0.0
    %516 = vmatpush.msra.mxu0 0.0
    %517 = vmatpush.msra.mxu0 0.0
    %518 = vmatpush.msra.mxu0 0.0
    %519 = vmatpush.msra.mxu0 0.0
    %520 = vmatpush.msra.mxu0 0.0
    %521 = vmatpush.msra.mxu0 0.0
    %522 = vmatpush.msra.mxu0 0.0
    %523 = vmatpush.msra.mxu0 0.0
    %524 = vmatpush.msra.mxu0 0.0
    %525 = vmatpush.msra.mxu0 0.0
    %526 = vmatpush.msra.mxu0 0.0
    %527 = vmatpush.msra.mxu0 0.0
    %528 = vmatpush.msra.mxu0 0.0
    %529 = vmatpush.msra.mxu0 %v336
    %530 = vmatpush.msra.mxu0 %v265
    %531 = vmatmul.f32.gmra.mxu0 %v305
    %v532 = vpop.f32.mrf.mxu0
    %v533 = vadd.f32 %v286, %v532
    %534 = vmatmul.f32.gmra.mxu0 %v308
    %v535 = vpop.f32.mrf.mxu0
    %v536 = vadd.f32 %v291, %v535
    %537 = vmatmul.f32.gmra.mxu0 %v311
    %v538 = vpop.f32.mrf.mxu0
    %v539 = vadd.f32 %v296, %v538
    %540 = vmatmul.f32.gmra.mxu0 %v314
    %v541 = vpop.f32.mrf.mxu0
    %v542 = vadd.f32 %v301, %v541
    %543 = vdwg.mxu0
    %544 = vmatpush.msra.mxu0 0.0
    %545 = vmatpush.msra.mxu0 0.0
    %546 = vmatpush.msra.mxu0 0.0
    %547 = vmatpush.msra.mxu0 0.0
    %548 = vmatpush.msra.mxu0 0.0
    %549 = vmatpush.msra.mxu0 0.0
    %550 = vmatpush.msra.mxu0 0.0
    %551 = vmatpush.msra.mxu0 0.0
    %552 = vmatpush.msra.mxu0 0.0
    %553 = vmatpush.msra.mxu0 0.0
    %554 = vmatpush.msra.mxu0 0.0
    %555 = vmatpush.msra.mxu0 0.0
    %556 = vmatpush.msra.mxu0 0.0
    %557 = vmatpush.msra.mxu0 0.0
    %558 = vmatpush.msra.mxu0 %v339
    %559 = vmatpush.msra.mxu0 %v266
    %560 = vmatmul.f32.gmra.mxu0 %v305
    %v561 = vpop.f32.mrf.mxu0
    %v562 = vadd.f32 %v286, %v561
    %563 = vmatmul.f32.gmra.mxu0 %v308
    %v564 = vpop.f32.mrf.mxu0
    %v565 = vadd.f32 %v291, %v564
    %566 = vmatmul.f32.gmra.mxu0 %v311
    %v567 = vpop.f32.mrf.mxu0
    %v568 = vadd.f32 %v296, %v567
    %569 = vmatmul.f32.gmra.mxu0 %v314
    %v570 = vpop.f32.mrf.mxu0
    %v571 = vadd.f32 %v301, %v570
    %572 = vdwg.mxu0
    %573 = vst [vmem:[#allocation2] sm:$0xff] %v359
    %574 = vst [vmem:[#allocation2 + $0x8] sm:$0xff] %v388
    %575 = vst [vmem:[#allocation2 + $0x10] sm:$0xff] %v417
    %576 = vst [vmem:[#allocation2 + $0x18] sm:$0xff] %v446
    %577 = vst [vmem:[#allocation2 + $0x20] sm:$0xff] %v475
    %578 = vst [vmem:[#allocation2 + $0x28] sm:$0xff] %v504
    %579 = vst [vmem:[#allocation2 + $0x30] sm:$0xff] %v533
    %580 = vst [vmem:[#allocation2 + $0x38] sm:$0xff] %v562
    %581 = vst [vmem:[#allocation2 + $0x40] sm:$0xff] %v362
    %582 = vst [vmem:[#allocation2 + $0x48] sm:$0xff] %v391
    %583 = vst [vmem:[#allocation2 + $0x50] sm:$0xff] %v420
    %584 = vst [vmem:[#allocation2 + $0x58] sm:$0xff] %v449
    %585 = vst [vmem:[#allocation2 + $0x60] sm:$0xff] %v478
    %586 = vst [vmem:[#allocation2 + $0x68] sm:$0xff] %v507
    %587 = vst [vmem:[#allocation2 + $0x70] sm:$0xff] %v536
    %588 = vst [vmem:[#allocation2 + $0x78] sm:$0xff] %v565
    %589 = vst [vmem:[#allocation2 + $0x80] sm:$0xff] %v365
    %590 = vst [vmem:[#allocation2 + $0x88] sm:$0xff] %v394
    %591 = vst [vmem:[#allocation2 + $0x90] sm:$0xff] %v423
    %592 = vst [vmem:[#allocation2 + $0x98] sm:$0xff] %v452
    %593 = vst [vmem:[#allocation2 + $0xa0] sm:$0xff] %v481
    %594 = vst [vmem:[#allocation2 + $0xa8] sm:$0xff] %v510
    %595 = vst [vmem:[#allocation2 + $0xb0] sm:$0xff] %v539
    %596 = vst [vmem:[#allocation2 + $0xb8] sm:$0xff] %v568
    %597 = vst [vmem:[#allocation2 + $0xc0] sm:$0xff] %v368
    %598 = vst [vmem:[#allocation2 + $0xc8] sm:$0xff] %v397
    %599 = vst [vmem:[#allocation2 + $0xd0] sm:$0xff] %v426
    %600 = vst [vmem:[#allocation2 + $0xd8] sm:$0xff] %v455
    %601 = vst [vmem:[#allocation2 + $0xe0] sm:$0xff] %v484
    %602 = vst [vmem:[#allocation2 + $0xe8] sm:$0xff] %v513
    %603 = vst [vmem:[#allocation2 + $0xf0] sm:$0xff] %v542
    %604 = vst [vmem:[#allocation2 + $0xf8] sm:$0xff] %v571
    // Predicated region
    $region22: #{decoder_forward.1} parent=1 // pred_check
      _
    $region23: #{decoder_forward.1} parent=1 // pred_check_branch
      %606 = sbr.rel (0) target = $region25
    $region24: #{decoder_forward.1} parent=1 // pred_region
      %608 = vsyncadd [#allocation3], 0
      %s609 = sshll.u32 [#allocation2], 4
      %s610 = int_to_ptr.vmem [resolvable:$true] %s609
      %s611 = sshll.u32 %s5, 4
      %s612 = int_to_ptr.hbm [resolvable:$true] %s611
      %617 = dma.vmem_to_hbm [thread:$0]  %s610, 4096, %s612, [#allocation3], 1024, 1024, 64
    $region25: #{decoder_forward.1} parent=1 // pred_fallthru
      _
    // Predicated region
    $region26: #{decoder_forward.1} parent=1 // pred_check
      _
    $region27: #{decoder_forward.1} parent=1 // pred_check_branch
      %619 = sbr.rel (0) target = $region29
    $region28: #{decoder_forward.1} parent=1 // pred_region
      %621 = dma.done [#allocation3], 4096
    $region29: #{decoder_forward.1} parent=1 // pred_fallthru
      _
    %622 = vsyncpa [#allocation3], 1

</llo_original>
